<compile_context>
chip_gen: v5e
topology: v5e:2x2
jax: 0.10.0
libtpu: 0.0.40
codegen_flags: <defaults>
</compile_context>

<pallas_src>
import functools

import numpy as np
import jax
import jax.numpy as jnp
from jax import lax
from jax.experimental import pallas as pl
from jax.experimental.pallas import tpu as pltpu

OUT_H, OUT_W = 121, 240  # F.interpolate(x, size=(121, 240)) in the forecast branch


# ----------------------------------------------------------------------------
# Pallas kernel: fused multi-channel nearest-neighbor resize as MXU matmuls.
# ----------------------------------------------------------------------------
def _resize_kernel(x_ref, a_ref, b_ref, o_ref, *scratch_refs,
                   swapped, merged, c_blk, compute_dtype):
    """One grid step: nearest-resize a block of c_blk channels.

    The output lane dimension is ALWAYS 240 (never 121):
      x_ref : (1, c_blk, d2, d3)    input block, ORIGINAL NCHW orientation
      o_ref : (1, c_blk, 121, 240)  resized plane in the PyTorch orientation

    not swapped (d2 >= d3):  o_c = A @ x_c @ B
      a_ref : (121, d2)   one-hot 121-selection along d2          (L)
      b_ref : (d3, 240)   one-hot 240-selection along d3, as R = selW^T
    swapped (d3 > d2):       o_c[i, j] = x_c[selW(j), selH(i)]
      a_ref : (121, d3)   one-hot 121-selection along d3          (Lh)
      b_ref : (240, d2)   one-hot 240-selection along d2          (Sw)
      computed as  z_c = Sw @ x_c  (240, d3), then o_c = Lh (.) z_c contracting
      both LAST axes (trans-B) — x is never explicitly transposed and the store
      stays 240-lane dense.
    """
    out_dtype = o_ref.dtype
    d2, d3 = x_ref.shape[2], x_ref.shape[3]

    a_sel = a_ref[...]          # already in compute_dtype (pre-cast on host)
    b_sel = b_ref[...]

    if not swapped:
        if merged:
            # Stage 1 (merged big-M lane expansion): (c_blk*d2, d3) @ (d3, 240).
            # d2 is sublane-tile aligned, so the reshape merge is layout-free.
            y_ref = scratch_refs[0]                     # (c_blk*d2, 240) compute_dtype
            x = x_ref[0]                                # (c_blk, d2, d3)
            if x.dtype != compute_dtype:
                x = x.astype(compute_dtype)
            y = jnp.dot(x.reshape(c_blk * d2, d3), b_sel,
                        preferred_element_type=jnp.float32)
            # One-hot selection is exact -> the cast back to bf16 is lossless.
            y_ref[...] = y.astype(compute_dtype)
            # Stage 2: per-channel 121-row selection; sublane-aligned scratch slices.
            for c in range(c_blk):
                yc = y_ref[c * d2:(c + 1) * d2, :]      # (d2, 240)
                o_ref[0, c] = jnp.dot(
                    a_sel, yc, preferred_element_type=jnp.float32).astype(out_dtype)
        else:
            # Fallback: d2 not sublane-tile aligned (merged reshape would relayout).
            # Per-channel loads keep live ranges small; both matmuls stay 240-lane.
            for c in range(c_blk):
                xc = x_ref[0, c]                        # (d2, d3)
                if xc.dtype != compute_dtype:
                    xc = xc.astype(compute_dtype)
                yc = jnp.dot(xc, b_sel,
                             preferred_element_type=jnp.float32).astype(compute_dtype)
                o_ref[0, c] = jnp.dot(
                    a_sel, yc, preferred_element_type=jnp.float32).astype(out_dtype)
    else:
        for c in range(c_blk):
            xc = x_ref[0, c]                            # (d2, d3)
            if xc.dtype != compute_dtype:
                xc = xc.astype(compute_dtype)
            # Stage 1: 240-selection along d2 (plain matmul, M=240, lanes=d3).
            zc = jnp.dot(b_sel, xc,
                         preferred_element_type=jnp.float32).astype(compute_dtype)  # (240, d3)
            # Stage 2: 121-selection along d3, contracting both LAST axes (trans-B);
            # result is produced directly in the (121, 240) lane-dense orientation.
            oc = lax.dot_general(a_sel, zc, (((1,), (1,)), ((), ())),
                                 preferred_element_type=jnp.float32)
            o_ref[0, c] = oc.astype(out_dtype)


def _nearest_selection_matrix(out_size, in_size):
    # PyTorch F.interpolate(mode='nearest'): src = min(floor(dst * in/out), in-1)
    idx = np.minimum(
        np.floor(np.arange(out_size) * (in_size / out_size)).astype(np.int64),
        in_size - 1,
    )
    sel = np.zeros((out_size, in_size), dtype=np.float32)
    sel[np.arange(out_size), idx] = 1.0
    return sel


def _plan_blocks(b, c, d2, d3, swapped, in_itemsize, cdt_itemsize, row_tile):
    """Choose the channel-block size and an explicit VMEM limit.

    Generation aware: v5e/v6e have 128 MiB VMEM per core; v7x has only 64 MiB per
    TensorCore with two cores running concurrent grid steps, so its per-step
    budget is smaller.  The grid is kept at >= min(4, B*C) steps so both v7x cores
    get work and the final block's writeback DMA is not fully exposed."""
    try:
        vmem_cap = int(pltpu.get_tpu_info().vmem_capacity_bytes)
    except Exception:  # pragma: no cover - be conservative if the query fails
        vmem_cap = 64 << 20
    budget = (20 << 20) if vmem_cap >= (96 << 20) else (12 << 20)

    p, q = OUT_H, OUT_W
    sel_elems = (p * d3 + q * d2) if swapped else (p * d2 + d3 * q)
    sel_bytes = 2 * sel_elems * cdt_itemsize           # pipeline double-buffers them
    min_steps = min(4, b * c)

    def footprint(cb):
        in_blk = cb * d2 * d3 * in_itemsize             # double-buffered input block
        out_blk = cb * p * q * in_itemsize               # double-buffered output block
        merged = (not swapped) and cb > 1 and (d2 % row_tile == 0)
        scratch = cb * d2 * q * cdt_itemsize if merged else 0
        # transient f32 matmul results before the cast back to the compute dtype
        trans = 4 * (cb * d2 * q if merged else max(d2 * q, q * d3)) + 4 * p * q
        return 2 * in_blk + 2 * out_blk + sel_bytes + scratch + trans + (1 << 20)

    best = 1
    for cb in range(1, min(c, 32) + 1):
        if c % cb != 0:
            continue
        if b * (c // cb) < min_steps:
            continue
        if footprint(cb) <= budget:
            best = cb
    vmem_limit = int(min(vmem_cap * 3 // 4,
                         max(footprint(best) + (8 << 20), 32 << 20)))
    return best, vmem_limit


def nearest_resize_fused(x, out_h=OUT_H, out_w=OUT_W):
    """Fused replacement for the forecast branch's
           x.permute(0, 1, 3, 2)            (iff W > H)
           F.interpolate(x, size=(121, 240))   # nearest, NCHW
       The kernel returns y of shape (B, C, 121, 240) for BOTH orientations
       (lane dimension always 240), so exactly one channel-to-last transpose
       remains outside the kernel."""
    b, c, d2, d3 = x.shape
    swapped = d3 > d2

    if x.dtype == jnp.bfloat16 or x.dtype == jnp.float32:
        compute_dtype = x.dtype
    else:
        # TODO(synk): integer inputs round-trip through f32 on the MXU (exact < 2^24).
        compute_dtype = jnp.float32

    in_itemsize = jnp.dtype(x.dtype).itemsize
    cdt_itemsize = jnp.dtype(compute_dtype).itemsize
    row_tile = 8 * max(1, 4 // cdt_itemsize)        # sublane rows per 32-bit tile

    if swapped:
        # o[b,c,i,j] = x[b,c, selW(j), selH(i)];  selH: 121->d3, selW: 240->d2
        a_sel = jnp.asarray(_nearest_selection_matrix(out_h, d3), dtype=compute_dtype)   # (121, d3)
        b_sel = jnp.asarray(_nearest_selection_matrix(out_w, d2), dtype=compute_dtype)   # (240, d2)
    else:
        # o[b,c,i,j] = x[b,c, selH(i), selW(j)];  selH: 121->d2, selW: 240->d3
        a_sel = jnp.asarray(_nearest_selection_matrix(out_h, d2), dtype=compute_dtype)     # (121, d2)
        b_sel = jnp.asarray(_nearest_selection_matrix(out_w, d3).T, dtype=compute_dtype)   # (d3, 240)

    c_blk, vmem_limit = _plan_blocks(b, c, d2, d3, swapped,
                                     in_itemsize, cdt_itemsize, row_tile)
    use_merged = (not swapped) and c_blk > 1 and (d2 % row_tile == 0)

    scratch_shapes = []
    if use_merged:
        scratch_shapes.append(pltpu.VMEM((c_blk * d2, out_w), compute_dtype))

    kernel = functools.partial(_resize_kernel, swapped=swapped, merged=use_merged,
                               c_blk=c_blk, compute_dtype=compute_dtype)

    # Advisory cost so XLA schedules/overlaps the trailing channel permute sensibly.
    flops = 2 * b * c * (d2 * d3 * out_w + out_h * out_w * (d3 if swapped else d2))
    bytes_accessed = (b * c * (d2 * d3 + out_h * out_w)) * in_itemsize \
        + int(a_sel.size + b_sel.size) * cdt_itemsize

    y = pl.pallas_call(
        kernel,
        out_shape=jax.ShapeDtypeStruct((b, c, out_h, out_w), x.dtype),
        grid_spec=pltpu.PrefetchScalarGridSpec(
            num_scalar_prefetch=0,
            grid=(b, c // c_blk),
            in_specs=[
                pl.BlockSpec((1, c_blk, d2, d3), lambda bi, ci: (bi, ci, 0, 0)),
                pl.BlockSpec(a_sel.shape, lambda bi, ci: (0, 0)),
                pl.BlockSpec(b_sel.shape, lambda bi, ci: (0, 0)),
            ],
            out_specs=pl.BlockSpec((1, c_blk, out_h, out_w),
                                   lambda bi, ci: (bi, ci, 0, 0)),
            scratch_shapes=tuple(scratch_shapes),
        ),
        compiler_params=pltpu.CompilerParams(
            dimension_semantics=("parallel", "parallel"),
            vmem_limit_bytes=vmem_limit),
        cost_estimate=pl.CostEstimate(flops=int(flops), transcendentals=0,
                                      bytes_accessed=int(bytes_accessed)),
    )(x, a_sel, b_sel)
    return y


# ----------------------------------------------------------------------------
# Module port.
# ----------------------------------------------------------------------------
class ConvCNPWeather:
    """JAX/Pallas port of ConvCNPWeather, mode='forecast', decoder=None.

    No learned parameters participate in this forward path (the MLP, ViT and
    convDeepSet submodules declared in the PyTorch __init__ are never invoked
    by forward() for this configuration)."""

    def __init__(self, in_channels, out_channels, int_channels,
                 mode='forecast', decoder=None, two_frames=False):
        self.in_channels = in_channels
        self.out_channels = out_channels
        self.int_channels = int_channels
        self.mode = mode
        self.decoder = decoder
        self.two_frames = two_frames
        self.int_x = 256
        self.int_y = 128
        # Internal (240, 121) target grid, normalized by 360 as in the PyTorch code.
        self.int_grid = [
            (jnp.linspace(0.0, 360.0, 240) / 360.0)[None, :].astype(jnp.float32),
            (jnp.linspace(-90.0, 90.0, 121) / 360.0)[None, :].astype(jnp.float32),
        ]
        # TODO(synk): convDeepSet / ViT / MLP definitions were not provided and are
        # unused in this (mode='forecast', decoder=None) forward path; not ported.
        # TODO(synk): __init__ loads era5 lon/lat .npy grids (file I/O, unused in
        # forward); omitted.

    def forward(self, task, film_index=None):
        if self.mode == 'assimilation':
            raise NotImplementedError(
                "assimilation encoders require convDeepSet/ViT definitions")  # TODO(synk)
        x = task['y_context']  # NCHW

        if self.mode == 'forecast':
            # Conditional pre-transpose + nearest interpolate fused into one Pallas
            # kernel that always emits (B, C, 121, 240); the two PyTorch output
            # permutes collapse to a single channel-to-last permute.
            y = nearest_resize_fused(x, OUT_H, OUT_W)       # (B, C, 121, 240)
            return jnp.transpose(y, (0, 3, 2, 1))           # (B, 240, 121, C)

        # Any other (non-assimilation) mode: PyTorch applies only the conditional permute.
        if x.shape[-1] > x.shape[-2]:
            x = jnp.transpose(x, (0, 1, 3, 2))
        return x

    __call__ = forward


# ----------------------------------------------------------------------------
# Pure-JAX reference (same nearest-neighbor index rule) for a correctness check.
# ----------------------------------------------------------------------------
def _reference_forward(y_context):
    x = y_context
    if x.shape[-1] > x.shape[-2]:
        x = jnp.transpose(x, (0, 1, 3, 2))
    H, W = x.shape[2], x.shape[3]
    hi = np.minimum(np.floor(np.arange(OUT_H) * (H / OUT_H)).astype(np.int64), H - 1)
    wi = np.minimum(np.floor(np.arange(OUT_W) * (W / OUT_W)).astype(np.int64), W - 1)
    x = x[:, :, hi, :][:, :, :, wi]                        # (B, C, 121, 240)
    x = jnp.transpose(x, (0, 2, 3, 1))
    return jnp.transpose(x, (0, 2, 1, 3))                  # (B, 240, 121, C)


if __name__ == "__main__":
    key = jax.random.PRNGKey(0)
    B, C = 2, 4
    model = ConvCNPWeather(in_channels=C, out_channels=C, int_channels=32,
                           mode='forecast', decoder=None)

    # Exercise: swapped / non-swapped orientations, merged big-M stage-1,
    # per-channel fallback (d2 % row_tile != 0), and bf16.
    cases = [
        ((B, C, 16, 32), jnp.float32),    # swapped (W > H), f32
        ((B, C, 32, 16), jnp.float32),    # non-swapped, merged stage-1 (32 % 8 == 0)
        ((B, C, 30, 20), jnp.bfloat16),   # non-swapped, bf16 fallback (30 % 16 != 0)
        ((B, C, 20, 30), jnp.bfloat16),   # swapped, bf16
    ]
    for shape, dt in cases:
        key, sub = jax.random.split(key)
        y_context = jax.random.normal(sub, shape, dtype=jnp.float32).astype(dt)

        out = jax.block_until_ready(model({'y_context': y_context}))
        ref = jax.block_until_ready(_reference_forward(y_context))

        assert out.shape == (B, OUT_W, OUT_H, C), (shape, out.shape)
        assert out.dtype == y_context.dtype
        tol = 1e-6 if dt == jnp.float32 else 2e-2
        ok = jnp.allclose(out.astype(jnp.float32), ref.astype(jnp.float32),
                          atol=tol, rtol=tol)
        assert bool(ok), f"mismatch for input {shape} dtype {dt}"

    print("KERNEL_OK")
</pallas_src>

<mosaic_0001>
module attributes {stable_mosaic.version = 11 : i64} {
  func.func @_resize_kernel(%arg0: i32, %arg1: i32, %arg2: memref<1x2x16x32xf32, #tpu.memory_space<vmem>>, %arg3: memref<121x32xf32, #tpu.memory_space<vmem>>, %arg4: memref<240x16xf32, #tpu.memory_space<vmem>>, %arg5: memref<1x2x121x240xf32, #tpu.memory_space<vmem>>) attributes {dimension_semantics = [#tpu.dimension_semantics<parallel>, #tpu.dimension_semantics<parallel>], iteration_bounds = array<i64: 2, 2>, scalar_prefetch = 0 : i64, scratch_operands = 0 : i64, tpu.core_type = #tpu.core_type<tc>, window_params = [{transform_indices = @transform_0, window_bounds = array<i64: 1, 2, 16, 32>}, {pipeline_mode = #tpu.pipeline_mode<synchronous>, transform_indices = @transform_1, window_bounds = array<i64: 121, 32>}, {pipeline_mode = #tpu.pipeline_mode<synchronous>, transform_indices = @transform_2, window_bounds = array<i64: 240, 16>}, {transform_indices = @transform_3, window_bounds = array<i64: 1, 2, 121, 240>}]} {
    %c0 = arith.constant 0 : index
    %c0_0 = arith.constant 0 : index
    %0 = vector.load %arg3[%c0, %c0_0] : memref<121x32xf32, #tpu.memory_space<vmem>>, vector<121x32xf32>
    %c0_1 = arith.constant 0 : index
    %c0_2 = arith.constant 0 : index
    %1 = vector.load %arg4[%c0_1, %c0_2] : memref<240x16xf32, #tpu.memory_space<vmem>>, vector<240x16xf32>
    %c0_3 = arith.constant 0 : index
    %c0_4 = arith.constant 0 : index
    %c0_5 = arith.constant 0 : index
    %c0_6 = arith.constant 0 : index
    %2 = vector.load %arg2[%c0_3, %c0_4, %c0_5, %c0_6] : memref<1x2x16x32xf32, #tpu.memory_space<vmem>>, vector<1x1x16x32xf32>
    %3 = vector.shape_cast %2 : vector<1x1x16x32xf32> to vector<16x32xf32>
    %cst = arith.constant dense<0.000000e+00> : vector<240x32xf32>
    %4 = tpu.matmul %1, %3, %cst {dimension_numbers = #tpu.dot_dimension_numbers<[1], [0], [0], [1], [0, 0, 1, 1], [], []>} : vector<240x16xf32>, vector<16x32xf32>, vector<240x32xf32> -> vector<240x32xf32>
    %cst_7 = arith.constant dense<0.000000e+00> : vector<121x240xf32>
    %5 = tpu.matmul %0, %4, %cst_7 {dimension_numbers = #tpu.dot_dimension_numbers<[1], [1], [0], [0], [0, 0, 1, 0], [], []>} : vector<121x32xf32>, vector<240x32xf32>, vector<121x240xf32> -> vector<121x240xf32>
    %c0_8 = arith.constant 0 : index
    %c0_9 = arith.constant 0 : index
    %c0_10 = arith.constant 0 : index
    %c0_11 = arith.constant 0 : index
    %6 = vector.load %arg5[%c0_8, %c0_9, %c0_10, %c0_11] : memref<1x2x121x240xf32, #tpu.memory_space<vmem>>, vector<1x1x121x240xf32>
    %7 = vector.shape_cast %6 : vector<1x1x121x240xf32> to vector<121x240xf32>
    %8 = vector.shape_cast %5 : vector<121x240xf32> to vector<1x1x121x240xf32>
    tpu.vector_store %arg5[%c0_8, %c0_9, %c0_10, %c0_11], %8 {strides = array<i32>} : memref<1x2x121x240xf32, #tpu.memory_space<vmem>>, vector<1x1x121x240xf32>,
    %c0_12 = arith.constant 0 : index
    %c1 = arith.constant 1 : index
    %c0_13 = arith.constant 0 : index
    %c0_14 = arith.constant 0 : index
    %9 = vector.load %arg2[%c0_12, %c1, %c0_13, %c0_14] : memref<1x2x16x32xf32, #tpu.memory_space<vmem>>, vector<1x1x16x32xf32>
    %10 = vector.shape_cast %9 : vector<1x1x16x32xf32> to vector<16x32xf32>
    %cst_15 = arith.constant dense<0.000000e+00> : vector<240x32xf32>
    %11 = tpu.matmul %1, %10, %cst_15 {dimension_numbers = #tpu.dot_dimension_numbers<[1], [0], [0], [1], [0, 0, 1, 1], [], []>} : vector<240x16xf32>, vector<16x32xf32>, vector<240x32xf32> -> vector<240x32xf32>
    %cst_16 = arith.constant dense<0.000000e+00> : vector<121x240xf32>
    %12 = tpu.matmul %0, %11, %cst_16 {dimension_numbers = #tpu.dot_dimension_numbers<[1], [1], [0], [0], [0, 0, 1, 0], [], []>} : vector<121x32xf32>, vector<240x32xf32>, vector<121x240xf32> -> vector<121x240xf32>
    %c0_17 = arith.constant 0 : index
    %c1_18 = arith.constant 1 : index
    %c0_19 = arith.constant 0 : index
    %c0_20 = arith.constant 0 : index
    %13 = vector.load %arg5[%c0_17, %c1_18, %c0_19, %c0_20] : memref<1x2x121x240xf32, #tpu.memory_space<vmem>>, vector<1x1x121x240xf32>
    %14 = vector.shape_cast %13 : vector<1x1x121x240xf32> to vector<121x240xf32>
    %15 = vector.shape_cast %12 : vector<121x240xf32> to vector<1x1x121x240xf32>
    tpu.vector_store %arg5[%c0_17, %c1_18, %c0_19, %c0_20], %15 {strides = array<i32>} : memref<1x2x121x240xf32, #tpu.memory_space<vmem>>, vector<1x1x121x240xf32>,
    return
  }
  func.func @transform_0(%arg0: i32, %arg1: i32) -> (i32, i32, i32, i32) {
    %c0_i32 = arith.constant 0 : i32
    %c0_i32_0 = arith.constant 0 : i32
    %c0_i32_1 = arith.constant 0 : i32
    return %arg0, %arg1, %c0_i32, %c0_i32_0 : i32, i32, i32, i32
  }
  func.func @transform_1(%arg0: i32, %arg1: i32) -> (i32, i32) {
    %c0_i32 = arith.constant 0 : i32
    %c0_i32_0 = arith.constant 0 : i32
    %c0_i32_1 = arith.constant 0 : i32
    return %c0_i32, %c0_i32_0 : i32, i32
  }
  func.func @transform_2(%arg0: i32, %arg1: i32) -> (i32, i32) {
    %c0_i32 = arith.constant 0 : i32
    %c0_i32_0 = arith.constant 0 : i32
    %c0_i32_1 = arith.constant 0 : i32
    return %c0_i32, %c0_i32_0 : i32, i32
  }
  func.func @transform_3(%arg0: i32, %arg1: i32) -> (i32, i32, i32, i32) {
    %c0_i32 = arith.constant 0 : i32
    %c0_i32_0 = arith.constant 0 : i32
    %c0_i32_1 = arith.constant 0 : i32
    return %arg0, %arg1, %c0_i32, %c0_i32_0 : i32, i32, i32, i32
  }
}

</mosaic_0001>

<llo_original>
// kernel: tpu_custom_call.1
$region0: #{tpu_custom_call.1}
  #allocation0 [shape = 'u32[]', space=smem, size = 0x4, offset = 0x4, fixed_abs, tag = 'smem constant byte address 0x4 - core index']
  #allocation1 [shape = 'u32[72,128]{1,0:T(1,128)}', space=vmem, size = 0x9000, scoped, tag = 'internal scratch']
  %s0 = inlined_call_operand.vmem [shape: f32[2,4,16,32], index: 0, kind: input, shape index: {}]
  %s1 = inlined_call_operand.vmem [shape: f32[121,32], index: 1, kind: input, shape index: {}]
  %s2 = inlined_call_operand.vmem [shape: f32[240,16], index: 2, kind: input, shape index: {}]
  %s3 = inlined_call_operand.vmem [shape: f32[2,4,121,240], index: 3, kind: output, shape index: {}]
  %s4 = sld [smem:[#allocation0]]
  $region45: #{tpu_custom_call.1} parent=0
    _
  %s6 = ssub.s32 1, %s4
  %s7 = scalar_select 0, %s6, %s4
  loop: start=0, step=1, limit=6
  $region2: #{tpu_custom_call.1} parent=0 // loop_pre_header
    _
  $region3: #{tpu_custom_call.1} parent=0 // loop_header
    %s9 = sphi 0, %s13
    %p10 = scmp.ge.s32.totalorder %s9, 6
    %s16 = sphi 0, %s28
    %s17 = sphi 0, %s24
    %s18 = sphi 0, %s16
    %s19 = sphi 0, %s17
    %s20 = sphi 0, %s18
    %s21 = sphi 0, %s19
    %s33 = sphi 0, %s35
    %s36 = sphi 0, %s33
    %s37 = sphi 0, %s36
    %s53 = sphi 0, %s37
    %s57 = sphi 0, %s57
    %s59 = sphi 0, %s57
    %s60 = sphi 0, %s59
    %s74 = sphi 0, %s60
    %s78 = sphi 0, %s78
    %s80 = sphi 0, %s78
    %s81 = sphi 0, %s80
    %s95 = sphi 0, %s81
    %s103 = sphi 0, %s105
    %s106 = sphi 0, %s103
    %s107 = sphi 0, %s106
    %s123 = sphi 0, %s107
  $region4: #{tpu_custom_call.1} parent=0 // loop_header_branch
    %12 = sbr.rel (%p10) target = $region8
  $region5: #{tpu_custom_call.1} parent=0 // loop_body
    %s14 = ssub.s32 %s9, 1
    %s15 = ssub.s32 %s9, 2
    %s22 = sadd.s32 1, %s17
    %p23 = scmp.ge.s32.totalorder %s22, 2
    %s24 = scalar_select %p23, 0, %s22
    %s25 = sadd.s32 1, %s16
    %s26 = scalar_select %p23, %s25, %s16
    %p27 = scmp.ge.s32.totalorder %s26, 2
    %s28 = scalar_select %p27, 0, %s26
    %s29 = ssub.s32 %s16, %s28
    %s30 = ssub.s32 %s17, %s24
    %s31 = sor.u32 %s29, %s30
    %p32 = scmp.eq.s32.totalorder %s31, 0
    %s34 = sadd.s32 %s33, 1
    %s35 = scalar_select %p32, %s33, %s34
    %p38 = pneg %p32
    %p39 = scmp.eq.s32.totalorder %s9, 3
    %p40 = por %p38, %p39
    %p41 = scmp.ne.s32.totalorder %s33, %s36
    %p42 = scmp.eq.s32.totalorder %s9, 0
    %p43 = por %p41, %p42
    %p44 = scmp.ne.s32.totalorder %s33, %s36
    %p45 = scmp.eq.s32.totalorder %s14, 3
    %p46 = por %p44, %p45
    %p47 = scmp.ne.s32.totalorder %s36, %s37
    %p48 = scmp.eq.s32.totalorder %s14, 0
    %p49 = por %p47, %p48
    %p50 = scmp.ne.s32.totalorder %s36, %s37
    %p51 = scmp.eq.s32.totalorder %s15, 3
    %p52 = por %p50, %p51
    %p54 = scmp.ne.s32.totalorder %s37, %s53
    %p55 = scmp.eq.s32.totalorder %s15, 0
    %p56 = por %p54, %p55
    %s58 = sadd.s32 %s57, 1
    %p61 = scmp.eq.s32.totalorder %s9, 3
    %p62 = scmp.ne.s32.totalorder %s57, %s59
    %p63 = scmp.eq.s32.totalorder %s9, 0
    %p64 = por %p62, %p63
    %p65 = scmp.ne.s32.totalorder %s57, %s59
    %p66 = scmp.eq.s32.totalorder %s14, 3
    %p67 = por %p65, %p66
    %p68 = scmp.ne.s32.totalorder %s59, %s60
    %p69 = scmp.eq.s32.totalorder %s14, 0
    %p70 = por %p68, %p69
    %p71 = scmp.ne.s32.totalorder %s59, %s60
    %p72 = scmp.eq.s32.totalorder %s15, 3
    %p73 = por %p71, %p72
    %p75 = scmp.ne.s32.totalorder %s60, %s74
    %p76 = scmp.eq.s32.totalorder %s15, 0
    %p77 = por %p75, %p76
    %s79 = sadd.s32 %s78, 1
    %p82 = scmp.eq.s32.totalorder %s9, 3
    %p83 = scmp.ne.s32.totalorder %s78, %s80
    %p84 = scmp.eq.s32.totalorder %s9, 0
    %p85 = por %p83, %p84
    %p86 = scmp.ne.s32.totalorder %s78, %s80
    %p87 = scmp.eq.s32.totalorder %s14, 3
    %p88 = por %p86, %p87
    %p89 = scmp.ne.s32.totalorder %s80, %s81
    %p90 = scmp.eq.s32.totalorder %s14, 0
    %p91 = por %p89, %p90
    %p92 = scmp.ne.s32.totalorder %s80, %s81
    %p93 = scmp.eq.s32.totalorder %s15, 3
    %p94 = por %p92, %p93
    %p96 = scmp.ne.s32.totalorder %s81, %s95
    %p97 = scmp.eq.s32.totalorder %s15, 0
    %p98 = por %p96, %p97
    %s99 = ssub.s32 %s16, %s28
    %s100 = ssub.s32 %s17, %s24
    %s101 = sor.u32 %s99, %s100
    %p102 = scmp.eq.s32.totalorder %s101, 0
    %s104 = sadd.s32 %s103, 1
    %s105 = scalar_select %p102, %s103, %s104
    %p108 = pneg %p102
    %p109 = scmp.eq.s32.totalorder %s9, 3
    %p110 = por %p108, %p109
    %p111 = scmp.ne.s32.totalorder %s103, %s106
    %p112 = scmp.eq.s32.totalorder %s9, 0
    %p113 = por %p111, %p112
    %p114 = scmp.ne.s32.totalorder %s103, %s106
    %p115 = scmp.eq.s32.totalorder %s14, 3
    %p116 = por %p114, %p115
    %p117 = scmp.ne.s32.totalorder %s106, %s107
    %p118 = scmp.eq.s32.totalorder %s14, 0
    %p119 = por %p117, %p118
    %p120 = scmp.ne.s32.totalorder %s106, %s107
    %p121 = scmp.eq.s32.totalorder %s15, 3
    %p122 = por %p120, %p121
    %p124 = scmp.ne.s32.totalorder %s107, %s123
    %p125 = scmp.eq.s32.totalorder %s15, 0
    %p126 = por %p124, %p125
    %p127 = scmp.le.s32.totalorder 1, %s9
    %p128 = scmp.lt.s32.totalorder %s9, 5
    %p129 = pnand %p127, %p128
    %p130 = pneg %p129
    // Predicated region
    $region9: #{tpu_custom_call.1} parent=5 // pred_check
      _
    $region10: #{tpu_custom_call.1} parent=5 // pred_check_branch
      %132 = sbr.rel (%p129) target = $region12
    $region11: #{tpu_custom_call.1} parent=5 // pred_region
      %s133 = ssub.s32 %s9, 1
      // Predicated region
      $region13: #{tpu_custom_call.1} parent=11 // pred_check
        %p134 = pneg %p70
      $region14: #{tpu_custom_call.1} parent=11 // pred_check_branch
        %136 = sbr.rel (%p134) target = $region16
      $region15: #{tpu_custom_call.1} parent=11 // pred_region
        _
      $region16: #{tpu_custom_call.1} parent=11 // pred_fallthru
        _
      // Predicated region
      $region17: #{tpu_custom_call.1} parent=11 // pred_check
        %p137 = pneg %p91
      $region18: #{tpu_custom_call.1} parent=11 // pred_check_branch
        %139 = sbr.rel (%p137) target = $region20
      $region19: #{tpu_custom_call.1} parent=11 // pred_region
        _
      $region20: #{tpu_custom_call.1} parent=11 // pred_fallthru
        _
    $region12: #{tpu_custom_call.1} parent=5 // pred_fallthru
      _
    %p140 = scmp.lt.s32.totalorder %s9, 4
    // Predicated region
    $region21: #{tpu_custom_call.1} parent=5 // pred_check
      %p141 = pneg %p140
    $region22: #{tpu_custom_call.1} parent=5 // pred_check_branch
      %143 = sbr.rel (%p141) target = $region24
    $region23: #{tpu_custom_call.1} parent=5 // pred_region
      // Predicated region
      $region25: #{tpu_custom_call.1} parent=23 // pred_check
        %p144 = pneg %p43
      $region26: #{tpu_custom_call.1} parent=23 // pred_check_branch
        %146 = sbr.rel (%p144) target = $region28
      $region27: #{tpu_custom_call.1} parent=23 // pred_region
        %s147 = smul.u32 2, %s17
        %p148 = scmp.lt.s32.totalorder %s16, 1
        %s149 = scalar_select %p148, %s16, 1
        %p150 = scmp.lt.s32.totalorder %s147, 3
        %s151 = scalar_select %p150, %s147, 3
        %s152 = smul.addr %s151, 2
        %s153 = smul.addr %s149, 8
        %s154 = sadd.s32 %s152, %s153
        %s155 = smul.addr %s154, 8
        %s156 = scalar_lea.vmem %s0, %s155
        %s157 = smul.u32 2, %s17
      $region28: #{tpu_custom_call.1} parent=23 // pred_fallthru
        _
    $region24: #{tpu_custom_call.1} parent=5 // pred_fallthru
      _
    %p158 = scmp.le.s32.totalorder 1, %s9
    %p159 = scmp.lt.s32.totalorder %s9, 5
    %p160 = pnand %p158, %p159
    %p161 = pneg %p160
    // Predicated region
    $region29: #{tpu_custom_call.1} parent=5 // pred_check
      _
    $region30: #{tpu_custom_call.1} parent=5 // pred_check_branch
      %163 = sbr.rel (%p160) target = $region32
    $region31: #{tpu_custom_call.1} parent=5 // pred_region
      %s164 = ssub.s32 %s9, 1
      %s165 = smul.u32 2, %s19
      %p166 = scmp.lt.s32.totalorder %s18, 1
      %s167 = scalar_select %p166, %s18, 1
      %p168 = scmp.lt.s32.totalorder %s165, 3
      %s169 = scalar_select %p168, %s165, 3
      %s170 = smul.addr %s169, 2
      %s171 = smul.addr %s167, 8
      %s172 = sadd.s32 %s170, %s171
      %s173 = smul.addr %s172, 8
      %s174 = scalar_lea.vmem %s0, %s173
      %p175 = pneg %p49
      %p176 = pneg %p46
      %p177 = pneg %p70
      %p178 = pneg %p67
      %p179 = pneg %p91
      %p180 = pneg %p88
      %p181 = pneg %p119
      %p182 = pneg %p116
      %s183 = smul.u32 2, %s19
      %p184 = scmp.lt.s32.totalorder %s18, 1
      %s185 = scalar_select %p184, %s18, 1
      %p186 = scmp.lt.s32.totalorder %s183, 3
      %s187 = scalar_select %p186, %s183, 3
      %s188 = smul.addr %s187, 32
      %s189 = smul.addr %s185, 128
      %s190 = sadd.s32 %s188, %s189
      %s191 = smul.addr %s190, 8
      %s192 = scalar_lea.vmem %s3, %s191
      %s193 = smul.u32 2, %s19
      %p194 = scmp.lt.s32.totalorder %s18, 1
      %s195 = scalar_select %p194, %s18, 1
      %p196 = scmp.lt.s32.totalorder %s193, 3
      %s197 = scalar_select %p196, %s193, 3
      %s198 = smul.addr %s197, 2
      %s199 = smul.addr %s195, 8
      %s200 = sadd.s32 %s198, %s199
      %s201 = smul.addr %s200, 8
      %s202 = scalar_lea.vmem %s0, %s201
      %s203 = smul.u32 2, %s19
      %s204 = smul.u32 2, %s19
      %p205 = scmp.lt.s32.totalorder %s18, 1
      %s206 = scalar_select %p205, %s18, 1
      %p207 = scmp.lt.s32.totalorder %s204, 3
      %s208 = scalar_select %p207, %s204, 3
      %s209 = smul.addr %s208, 32
      %s210 = smul.addr %s206, 128
      %s211 = sadd.s32 %s209, %s210
      %s212 = smul.addr %s211, 8
      %s213 = scalar_lea.vmem %s3, %s212
      %s214 = smul.u32 2, %s19
      %v215 = vld [vmem:[%s1] sm:$0xff]
      %v216 = vld [vmem:[%s1 + $0x8] sm:$0xff]
      %v217 = vld [vmem:[%s1 + $0x10] sm:$0xff]
      %v218 = vld [vmem:[%s1 + $0x18] sm:$0xff]
      %v219 = vld [vmem:[%s1 + $0x20] sm:$0xff]
      %v220 = vld [vmem:[%s1 + $0x28] sm:$0xff]
      %v221 = vld [vmem:[%s1 + $0x30] sm:$0xff]
      %v222 = vld [vmem:[%s1 + $0x38] sm:$0xff]
      %v223 = vld [vmem:[%s1 + $0x40] sm:$0xff]
      %v224 = vld [vmem:[%s1 + $0x48] sm:$0xff]
      %v225 = vld [vmem:[%s1 + $0x50] sm:$0xff]
      %v226 = vld [vmem:[%s1 + $0x58] sm:$0xff]
      %v227 = vld [vmem:[%s1 + $0x60] sm:$0xff]
      %v228 = vld [vmem:[%s1 + $0x68] sm:$0xff]
      %v229 = vld [vmem:[%s1 + $0x70] sm:$0xff]
      %v230 = vld [vmem:[%s1 + $0x78] sm:$0x1]
      %v231 = vld [vmem:[%s2] sm:$0xff]
      %v232 = vld [vmem:[%s2 + $0x8] sm:$0xff]
      %v233 = vld [vmem:[%s2 + $0x10] sm:$0xff]
      %v234 = vld [vmem:[%s2 + $0x18] sm:$0xff]
      %v235 = vld [vmem:[%s2 + $0x20] sm:$0xff]
      %v236 = vld [vmem:[%s2 + $0x28] sm:$0xff]
      %v237 = vld [vmem:[%s2 + $0x30] sm:$0xff]
      %v238 = vld [vmem:[%s2 + $0x38] sm:$0xff]
      %v239 = vld [vmem:[%s2 + $0x40] sm:$0xff]
      %v240 = vld [vmem:[%s2 + $0x48] sm:$0xff]
      %v241 = vld [vmem:[%s2 + $0x50] sm:$0xff]
      %v242 = vld [vmem:[%s2 + $0x58] sm:$0xff]
      %v243 = vld [vmem:[%s2 + $0x60] sm:$0xff]
      %v244 = vld [vmem:[%s2 + $0x68] sm:$0xff]
      %v245 = vld [vmem:[%s2 + $0x70] sm:$0xff]
      %v246 = vld [vmem:[%s2 + $0x78] sm:$0xff]
      %v247 = vld [vmem:[%s2 + $0x80] sm:$0xff]
      %v248 = vld [vmem:[%s2 + $0x88] sm:$0xff]
      %v249 = vld [vmem:[%s2 + $0x90] sm:$0xff]
      %v250 = vld [vmem:[%s2 + $0x98] sm:$0xff]
      %v251 = vld [vmem:[%s2 + $0xa0] sm:$0xff]
      %v252 = vld [vmem:[%s2 + $0xa8] sm:$0xff]
      %v253 = vld [vmem:[%s2 + $0xb0] sm:$0xff]
      %v254 = vld [vmem:[%s2 + $0xb8] sm:$0xff]
      %v255 = vld [vmem:[%s2 + $0xc0] sm:$0xff]
      %v256 = vld [vmem:[%s2 + $0xc8] sm:$0xff]
      %v257 = vld [vmem:[%s2 + $0xd0] sm:$0xff]
      %v258 = vld [vmem:[%s2 + $0xd8] sm:$0xff]
      %v259 = vld [vmem:[%s2 + $0xe0] sm:$0xff]
      %v260 = vld [vmem:[%s2 + $0xe8] sm:$0xff]
      %v261 = vld [vmem:[%s202] sm:$0xff]
      %v262 = vld [vmem:[%s202 + $0x8] sm:$0xff]
      %vm263 = vcmask 130048
      %v265 = vsel %vm263, %v231, 0
      %v268 = vsel %vm263, %v232, 0
      %v271 = vsel %vm263, %v233, 0
      %v274 = vsel %vm263, %v234, 0
      %v277 = vsel %vm263, %v235, 0
      %v280 = vsel %vm263, %v236, 0
      %v283 = vsel %vm263, %v237, 0
      %v286 = vsel %vm263, %v238, 0
      %v289 = vsel %vm263, %v239, 0
      %v292 = vsel %vm263, %v240, 0
      %v295 = vsel %vm263, %v241, 0
      %v298 = vsel %vm263, %v242, 0
      %v301 = vsel %vm263, %v243, 0
      %v304 = vsel %vm263, %v244, 0
      %v307 = vsel %vm263, %v245, 0
      %v310 = vsel %vm263, %v246, 0
      %v313 = vsel %vm263, %v247, 0
      %v316 = vsel %vm263, %v248, 0
      %v319 = vsel %vm263, %v249, 0
      %v322 = vsel %vm263, %v250, 0
      %v325 = vsel %vm263, %v251, 0
      %v328 = vsel %vm263, %v252, 0
      %v331 = vsel %vm263, %v253, 0
      %v334 = vsel %vm263, %v254, 0
      %v337 = vsel %vm263, %v255, 0
      %v340 = vsel %vm263, %v256, 0
      %v343 = vsel %vm263, %v257, 0
      %v346 = vsel %vm263, %v258, 0
      %v349 = vsel %vm263, %v259, 0
      %v352 = vsel %vm263, %v260, 0
      %354 = vmatpush.msra.mxu0 0.0
      %355 = vmatpush.msra.mxu0 0.0
      %356 = vmatpush.msra.mxu0 0.0
      %357 = vmatpush.msra.mxu0 0.0
      %358 = vmatpush.msra.mxu0 0.0
      %359 = vmatpush.msra.mxu0 0.0
      %360 = vmatpush.msra.mxu0 0.0
      %361 = vmatpush.msra.mxu0 0.0
      %362 = vmatpush.msra.mxu0 0.0
      %363 = vmatpush.msra.mxu0 0.0
      %364 = vmatpush.msra.mxu0 0.0
      %365 = vmatpush.msra.mxu0 0.0
      %366 = vmatpush.msra.mxu0 0.0
      %367 = vmatpush.msra.mxu0 0.0
      %368 = vmatpush.msra.mxu0 %v262
      %369 = vmatpush.msra.mxu0 %v261
      %370 = vmatmul.f32.gmra.mxu0 %v265
      %v371 = vpop.f32.mrf.mxu0
      %v372 = vadd.f32 0.0, %v371
      %373 = vmatmul.f32.gmra.mxu0 %v268
      %v374 = vpop.f32.mrf.mxu0
      %v375 = vadd.f32 0.0, %v374
      %376 = vmatmul.f32.gmra.mxu0 %v271
      %v377 = vpop.f32.mrf.mxu0
      %v378 = vadd.f32 0.0, %v377
      %379 = vmatmul.f32.gmra.mxu0 %v274
      %v380 = vpop.f32.mrf.mxu0
      %v381 = vadd.f32 0.0, %v380
      %382 = vmatmul.f32.gmra.mxu0 %v277
      %v383 = vpop.f32.mrf.mxu0
      %v384 = vadd.f32 0.0, %v383
      %385 = vmatmul.f32.gmra.mxu0 %v280
      %v386 = vpop.f32.mrf.mxu0
      %v387 = vadd.f32 0.0, %v386
      %388 = vmatmul.f32.gmra.mxu0 %v283
      %v389 = vpop.f32.mrf.mxu0
      %v390 = vadd.f32 0.0, %v389
      %391 = vmatmul.f32.gmra.mxu0 %v286
      %v392 = vpop.f32.mrf.mxu0
      %v393 = vadd.f32 0.0, %v392
      %394 = vmatmul.f32.gmra.mxu0 %v289
      %v395 = vpop.f32.mrf.mxu0
      %v396 = vadd.f32 0.0, %v395
      %397 = vmatmul.f32.gmra.mxu0 %v292
      %v398 = vpop.f32.mrf.mxu0
      %v399 = vadd.f32 0.0, %v398
      %400 = vmatmul.f32.gmra.mxu0 %v295
      %v401 = vpop.f32.mrf.mxu0
      %v402 = vadd.f32 0.0, %v401
      %403 = vmatmul.f32.gmra.mxu0 %v298
      %v404 = vpop.f32.mrf.mxu0
      %v405 = vadd.f32 0.0, %v404
      %406 = vmatmul.f32.gmra.mxu0 %v301
      %v407 = vpop.f32.mrf.mxu0
      %v408 = vadd.f32 0.0, %v407
      %409 = vmatmul.f32.gmra.mxu0 %v304
      %v410 = vpop.f32.mrf.mxu0
      %v411 = vadd.f32 0.0, %v410
      %412 = vmatmul.f32.gmra.mxu0 %v307
      %v413 = vpop.f32.mrf.mxu0
      %v414 = vadd.f32 0.0, %v413
      %415 = vmatmul.f32.gmra.mxu0 %v310
      %v416 = vpop.f32.mrf.mxu0
      %v417 = vadd.f32 0.0, %v416
      %418 = vmatmul.f32.gmra.mxu0 %v313
      %v419 = vpop.f32.mrf.mxu0
      %v420 = vadd.f32 0.0, %v419
      %421 = vmatmul.f32.gmra.mxu0 %v316
      %v422 = vpop.f32.mrf.mxu0
      %v423 = vadd.f32 0.0, %v422
      %424 = vmatmul.f32.gmra.mxu0 %v319
      %v425 = vpop.f32.mrf.mxu0
      %v426 = vadd.f32 0.0, %v425
      %427 = vmatmul.f32.gmra.mxu0 %v322
      %v428 = vpop.f32.mrf.mxu0
      %v429 = vadd.f32 0.0, %v428
      %430 = vmatmul.f32.gmra.mxu0 %v325
      %v431 = vpop.f32.mrf.mxu0
      %v432 = vadd.f32 0.0, %v431
      %433 = vmatmul.f32.gmra.mxu0 %v328
      %v434 = vpop.f32.mrf.mxu0
      %v435 = vadd.f32 0.0, %v434
      %436 = vmatmul.f32.gmra.mxu0 %v331
      %v437 = vpop.f32.mrf.mxu0
      %v438 = vadd.f32 0.0, %v437
      %439 = vmatmul.f32.gmra.mxu0 %v334
      %v440 = vpop.f32.mrf.mxu0
      %v441 = vadd.f32 0.0, %v440
      %442 = vmatmul.f32.gmra.mxu0 %v337
      %v443 = vpop.f32.mrf.mxu0
      %v444 = vadd.f32 0.0, %v443
      %445 = vmatmul.f32.gmra.mxu0 %v340
      %v446 = vpop.f32.mrf.mxu0
      %v447 = vadd.f32 0.0, %v446
      %448 = vmatmul.f32.gmra.mxu0 %v343
      %v449 = vpop.f32.mrf.mxu0
      %v450 = vadd.f32 0.0, %v449
      %451 = vmatmul.f32.gmra.mxu0 %v346
      %v452 = vpop.f32.mrf.mxu0
      %v453 = vadd.f32 0.0, %v452
      %454 = vmatmul.f32.gmra.mxu0 %v349
      %v455 = vpop.f32.mrf.mxu0
      %v456 = vadd.f32 0.0, %v455
      %457 = vmatmul.f32.gmra.mxu0 %v352
      %v458 = vpop.f32.mrf.mxu0
      %v459 = vadd.f32 0.0, %v458
      %460 = vdwg.mxu0
      %vm461 = vcmask 261120
      %v463 = vsel %vm461, %v215, 0
      %v466 = vsel %vm461, %v216, 0
      %v469 = vsel %vm461, %v217, 0
      %v472 = vsel %vm461, %v218, 0
      %v475 = vsel %vm461, %v219, 0
      %v478 = vsel %vm461, %v220, 0
      %v481 = vsel %vm461, %v221, 0
      %v484 = vsel %vm461, %v222, 0
      %v487 = vsel %vm461, %v223, 0
      %v490 = vsel %vm461, %v224, 0
      %v493 = vsel %vm461, %v225, 0
      %v496 = vsel %vm461, %v226, 0
      %v499 = vsel %vm461, %v227, 0
      %v502 = vsel %vm461, %v228, 0
      %v505 = vsel %vm461, %v229, 0
      %v508 = vsel %vm461, %v230, 0
      %v511 = vsel %vm461, %v372, 0
      %v514 = vsel %vm461, %v375, 0
      %v517 = vsel %vm461, %v378, 0
      %v520 = vsel %vm461, %v381, 0
      %v523 = vsel %vm461, %v384, 0
      %v526 = vsel %vm461, %v387, 0
      %v529 = vsel %vm461, %v390, 0
      %v532 = vsel %vm461, %v393, 0
      %v535 = vsel %vm461, %v396, 0
      %v538 = vsel %vm461, %v399, 0
      %v541 = vsel %vm461, %v402, 0
      %v544 = vsel %vm461, %v405, 0
      %v547 = vsel %vm461, %v408, 0
      %v550 = vsel %vm461, %v411, 0
      %v553 = vsel %vm461, %v414, 0
      %v556 = vsel %vm461, %v417, 0
      %v559 = vsel %vm461, %v420, 0
      %v562 = vsel %vm461, %v423, 0
      %v565 = vsel %vm461, %v426, 0
      %v568 = vsel %vm461, %v429, 0
      %v571 = vsel %vm461, %v432, 0
      %v574 = vsel %vm461, %v435, 0
      %v577 = vsel %vm461, %v438, 0
      %v580 = vsel %vm461, %v441, 0
      %v583 = vsel %vm461, %v444, 0
      %v586 = vsel %vm461, %v447, 0
      %v589 = vsel %vm461, %v450, 0
      %v592 = vsel %vm461, %v453, 0
      %v595 = vsel %vm461, %v456, 0
      %v598 = vsel %vm461, %v459, 0
      %600 = vmatpush.xpose.msra.mxu0 %v556
      %601 = vmatpush.xpose.msra.mxu0 %v553
      %602 = vmatpush.xpose.msra.mxu0 %v550
      %603 = vmatpush.xpose.msra.mxu0 %v547
      %604 = vmatpush.xpose.msra.mxu0 %v544
      %605 = vmatpush.xpose.msra.mxu0 %v541
      %606 = vmatpush.xpose.msra.mxu0 %v538
      %607 = vmatpush.xpose.msra.mxu0 %v535
      %608 = vmatpush.xpose.msra.mxu0 %v532
      %609 = vmatpush.xpose.msra.mxu0 %v529
      %610 = vmatpush.xpose.msra.mxu0 %v526
      %611 = vmatpush.xpose.msra.mxu0 %v523
      %612 = vmatpush.xpose.msra.mxu0 %v520
      %613 = vmatpush.xpose.msra.mxu0 %v517
      %614 = vmatpush.xpose.msra.mxu0 %v514
      %615 = vmatpush.xpose.msra.mxu0 %v511
      %616 = vmatmul.f32.gmra.mxu0 %v463
      %v617 = vpop.f32.mrf.mxu0
      %v618 = vadd.f32 0.0, %v617
      %619 = vmatmul.f32.gmra.mxu0 %v466
      %v620 = vpop.f32.mrf.mxu0
      %v621 = vadd.f32 0.0, %v620
      %622 = vmatmul.f32.gmra.mxu0 %v469
      %v623 = vpop.f32.mrf.mxu0
      %v624 = vadd.f32 0.0, %v623
      %625 = vmatmul.f32.gmra.mxu0 %v472
      %v626 = vpop.f32.mrf.mxu0
      %v627 = vadd.f32 0.0, %v626
      %628 = vmatmul.f32.gmra.mxu0 %v475
      %v629 = vpop.f32.mrf.mxu0
      %v630 = vadd.f32 0.0, %v629
      %631 = vmatmul.f32.gmra.mxu0 %v478
      %v632 = vpop.f32.mrf.mxu0
      %v633 = vadd.f32 0.0, %v632
      %634 = vmatmul.f32.gmra.mxu0 %v481
      %v635 = vpop.f32.mrf.mxu0
      %v636 = vadd.f32 0.0, %v635
      %637 = vmatmul.f32.gmra.mxu0 %v484
      %v638 = vpop.f32.mrf.mxu0
      %v639 = vadd.f32 0.0, %v638
      %640 = vmatmul.f32.gmra.mxu0 %v487
      %v641 = vpop.f32.mrf.mxu0
      %v642 = vadd.f32 0.0, %v641
      %643 = vmatmul.f32.gmra.mxu0 %v490
      %v644 = vpop.f32.mrf.mxu0
      %v645 = vadd.f32 0.0, %v644
      %646 = vmatmul.f32.gmra.mxu0 %v493
      %v647 = vpop.f32.mrf.mxu0
      %v648 = vadd.f32 0.0, %v647
      %649 = vmatmul.f32.gmra.mxu0 %v496
      %v650 = vpop.f32.mrf.mxu0
      %v651 = vadd.f32 0.0, %v650
      %652 = vmatmul.f32.gmra.mxu0 %v499
      %v653 = vpop.f32.mrf.mxu0
      %v654 = vadd.f32 0.0, %v653
      %655 = vmatmul.f32.gmra.mxu0 %v502
      %v656 = vpop.f32.mrf.mxu0
      %v657 = vadd.f32 0.0, %v656
      %658 = vmatmul.f32.gmra.mxu0 %v505
      %v659 = vpop.f32.mrf.mxu0
      %v660 = vadd.f32 0.0, %v659
      %661 = vmatmul.f32.gmra.mxu0 %v508
      %v662 = vpop.f32.mrf.mxu0
      %v663 = vadd.f32 0.0, %v662
      %664 = vdwg.mxu0
      %665 = vmatpush.xpose.msra.mxu0 0.0
      %666 = vmatpush.xpose.msra.mxu0 0.0
      %667 = vmatpush.xpose.msra.mxu0 %v598
      %668 = vmatpush.xpose.msra.mxu0 %v595
      %669 = vmatpush.xpose.msra.mxu0 %v592
      %670 = vmatpush.xpose.msra.mxu0 %v589
      %671 = vmatpush.xpose.msra.mxu0 %v586
      %672 = vmatpush.xpose.msra.mxu0 %v583
      %673 = vmatpush.xpose.msra.mxu0 %v580
      %674 = vmatpush.xpose.msra.mxu0 %v577
      %675 = vmatpush.xpose.msra.mxu0 %v574
      %676 = vmatpush.xpose.msra.mxu0 %v571
      %677 = vmatpush.xpose.msra.mxu0 %v568
      %678 = vmatpush.xpose.msra.mxu0 %v565
      %679 = vmatpush.xpose.msra.mxu0 %v562
      %680 = vmatpush.xpose.msra.mxu0 %v559
      %681 = vmatmul.f32.gmra.mxu0 %v463
      %v682 = vpop.f32.mrf.mxu0
      %v683 = vadd.f32 0.0, %v682
      %684 = vmatmul.f32.gmra.mxu0 %v466
      %v685 = vpop.f32.mrf.mxu0
      %v686 = vadd.f32 0.0, %v685
      %687 = vmatmul.f32.gmra.mxu0 %v469
      %v688 = vpop.f32.mrf.mxu0
      %v689 = vadd.f32 0.0, %v688
      %690 = vmatmul.f32.gmra.mxu0 %v472
      %v691 = vpop.f32.mrf.mxu0
      %v692 = vadd.f32 0.0, %v691
      %693 = vmatmul.f32.gmra.mxu0 %v475
      %v694 = vpop.f32.mrf.mxu0
      %v695 = vadd.f32 0.0, %v694
      %696 = vmatmul.f32.gmra.mxu0 %v478
      %v697 = vpop.f32.mrf.mxu0
      %v698 = vadd.f32 0.0, %v697
      %699 = vmatmul.f32.gmra.mxu0 %v481
      %v700 = vpop.f32.mrf.mxu0
      %v701 = vadd.f32 0.0, %v700
      %702 = vmatmul.f32.gmra.mxu0 %v484
      %v703 = vpop.f32.mrf.mxu0
      %v704 = vadd.f32 0.0, %v703
      %705 = vmatmul.f32.gmra.mxu0 %v487
      %v706 = vpop.f32.mrf.mxu0
      %v707 = vadd.f32 0.0, %v706
      %708 = vmatmul.f32.gmra.mxu0 %v490
      %v709 = vpop.f32.mrf.mxu0
      %v710 = vadd.f32 0.0, %v709
      %711 = vmatmul.f32.gmra.mxu0 %v493
      %v712 = vpop.f32.mrf.mxu0
      %v713 = vadd.f32 0.0, %v712
      %714 = vmatmul.f32.gmra.mxu0 %v496
      %v715 = vpop.f32.mrf.mxu0
      %v716 = vadd.f32 0.0, %v715
      %717 = vmatmul.f32.gmra.mxu0 %v499
      %v718 = vpop.f32.mrf.mxu0
      %v719 = vadd.f32 0.0, %v718
      %720 = vmatmul.f32.gmra.mxu0 %v502
      %v721 = vpop.f32.mrf.mxu0
      %v722 = vadd.f32 0.0, %v721
      %723 = vmatmul.f32.gmra.mxu0 %v505
      %v724 = vpop.f32.mrf.mxu0
      %v725 = vadd.f32 0.0, %v724
      %726 = vmatmul.f32.gmra.mxu0 %v508
      %v727 = vpop.f32.mrf.mxu0
      %v728 = vadd.f32 0.0, %v727
      %729 = vdwg.mxu0
      %730 = vst [vmem:[%s213] sm:$0xff] %v618
      %vm731 = vcmask 916480
      %732 = vst.msk [vmem:[%s213 + $0x8] sm:$0xff] %vm731, %v683
      %733 = vst [vmem:[%s213 + $0x10] sm:$0xff] %v621
      %734 = vst.msk [vmem:[%s213 + $0x18] sm:$0xff] %vm731, %v686
      %735 = vst [vmem:[%s213 + $0x20] sm:$0xff] %v624
      %736 = vst.msk [vmem:[%s213 + $0x28] sm:$0xff] %vm731, %v689
      %737 = vst [vmem:[%s213 + $0x30] sm:$0xff] %v627
      %738 = vst.msk [vmem:[%s213 + $0x38] sm:$0xff] %vm731, %v692
      %739 = vst [vmem:[%s213 + $0x40] sm:$0xff] %v630
      %740 = vst.msk [vmem:[%s213 + $0x48] sm:$0xff] %vm731, %v695
      %741 = vst [vmem:[%s213 + $0x50] sm:$0xff] %v633
      %742 = vst.msk [vmem:[%s213 + $0x58] sm:$0xff] %vm731, %v698
      %743 = vst [vmem:[%s213 + $0x60] sm:$0xff] %v636
      %744 = vst.msk [vmem:[%s213 + $0x68] sm:$0xff] %vm731, %v701
      %745 = vst [vmem:[%s213 + $0x70] sm:$0xff] %v639
      %746 = vst.msk [vmem:[%s213 + $0x78] sm:$0xff] %vm731, %v704
      %747 = vst [vmem:[%s213 + $0x80] sm:$0xff] %v642
      %748 = vst.msk [vmem:[%s213 + $0x88] sm:$0xff] %vm731, %v707
      %749 = vst [vmem:[%s213 + $0x90] sm:$0xff] %v645
      %750 = vst.msk [vmem:[%s213 + $0x98] sm:$0xff] %vm731, %v710
      %751 = vst [vmem:[%s213 + $0xa0] sm:$0xff] %v648
      %752 = vst.msk [vmem:[%s213 + $0xa8] sm:$0xff] %vm731, %v713
      %753 = vst [vmem:[%s213 + $0xb0] sm:$0xff] %v651
      %754 = vst.msk [vmem:[%s213 + $0xb8] sm:$0xff] %vm731, %v716
      %755 = vst [vmem:[%s213 + $0xc0] sm:$0xff] %v654
      %756 = vst.msk [vmem:[%s213 + $0xc8] sm:$0xff] %vm731, %v719
      %757 = vst [vmem:[%s213 + $0xd0] sm:$0xff] %v657
      %758 = vst.msk [vmem:[%s213 + $0xd8] sm:$0xff] %vm731, %v722
      %759 = vst [vmem:[%s213 + $0xe0] sm:$0xff] %v660
      %760 = vst.msk [vmem:[%s213 + $0xe8] sm:$0xff] %vm731, %v725
      %761 = vst [vmem:[%s213 + $0xf0] sm:$0x1] %v663
      %vm762 = vcmask 909312
      %763 = vst.msk [vmem:[%s213 + $0xf8] sm:$0x1] %vm762, %v728
      %s764 = scalar_lea.vmem %s202, 16
      %v765 = vld [vmem:[%s764] sm:$0xff]
      %v766 = vld [vmem:[%s764 + $0x8] sm:$0xff]
      %767 = vmatpush.msra.mxu0 0.0
      %768 = vmatpush.msra.mxu0 0.0
      %769 = vmatpush.msra.mxu0 0.0
      %770 = vmatpush.msra.mxu0 0.0
      %771 = vmatpush.msra.mxu0 0.0
      %772 = vmatpush.msra.mxu0 0.0
      %773 = vmatpush.msra.mxu0 0.0
      %774 = vmatpush.msra.mxu0 0.0
      %775 = vmatpush.msra.mxu0 0.0
      %776 = vmatpush.msra.mxu0 0.0
      %777 = vmatpush.msra.mxu0 0.0
      %778 = vmatpush.msra.mxu0 0.0
      %779 = vmatpush.msra.mxu0 0.0
      %780 = vmatpush.msra.mxu0 0.0
      %781 = vmatpush.msra.mxu0 %v766
      %782 = vmatpush.msra.mxu0 %v765
      %783 = vmatmul.f32.gmra.mxu0 %v265
      %v784 = vpop.f32.mrf.mxu0
      %v785 = vadd.f32 0.0, %v784
      %786 = vmatmul.f32.gmra.mxu0 %v268
      %v787 = vpop.f32.mrf.mxu0
      %v788 = vadd.f32 0.0, %v787
      %789 = vmatmul.f32.gmra.mxu0 %v271
      %v790 = vpop.f32.mrf.mxu0
      %v791 = vadd.f32 0.0, %v790
      %792 = vmatmul.f32.gmra.mxu0 %v274
      %v793 = vpop.f32.mrf.mxu0
      %v794 = vadd.f32 0.0, %v793
      %795 = vmatmul.f32.gmra.mxu0 %v277
      %v796 = vpop.f32.mrf.mxu0
      %v797 = vadd.f32 0.0, %v796
      %798 = vmatmul.f32.gmra.mxu0 %v280
      %v799 = vpop.f32.mrf.mxu0
      %v800 = vadd.f32 0.0, %v799
      %801 = vmatmul.f32.gmra.mxu0 %v283
      %v802 = vpop.f32.mrf.mxu0
      %v803 = vadd.f32 0.0, %v802
      %804 = vmatmul.f32.gmra.mxu0 %v286
      %v805 = vpop.f32.mrf.mxu0
      %v806 = vadd.f32 0.0, %v805
      %807 = vmatmul.f32.gmra.mxu0 %v289
      %v808 = vpop.f32.mrf.mxu0
      %v809 = vadd.f32 0.0, %v808
      %810 = vmatmul.f32.gmra.mxu0 %v292
      %v811 = vpop.f32.mrf.mxu0
      %v812 = vadd.f32 0.0, %v811
      %813 = vmatmul.f32.gmra.mxu0 %v295
      %v814 = vpop.f32.mrf.mxu0
      %v815 = vadd.f32 0.0, %v814
      %816 = vmatmul.f32.gmra.mxu0 %v298
      %v817 = vpop.f32.mrf.mxu0
      %v818 = vadd.f32 0.0, %v817
      %819 = vmatmul.f32.gmra.mxu0 %v301
      %v820 = vpop.f32.mrf.mxu0
      %v821 = vadd.f32 0.0, %v820
      %822 = vmatmul.f32.gmra.mxu0 %v304
      %v823 = vpop.f32.mrf.mxu0
      %v824 = vadd.f32 0.0, %v823
      %825 = vmatmul.f32.gmra.mxu0 %v307
      %v826 = vpop.f32.mrf.mxu0
      %v827 = vadd.f32 0.0, %v826
      %828 = vmatmul.f32.gmra.mxu0 %v310
      %v829 = vpop.f32.mrf.mxu0
      %v830 = vadd.f32 0.0, %v829
      %831 = vmatmul.f32.gmra.mxu0 %v313
      %v832 = vpop.f32.mrf.mxu0
      %v833 = vadd.f32 0.0, %v832
      %834 = vmatmul.f32.gmra.mxu0 %v316
      %v835 = vpop.f32.mrf.mxu0
      %v836 = vadd.f32 0.0, %v835
      %837 = vmatmul.f32.gmra.mxu0 %v319
      %v838 = vpop.f32.mrf.mxu0
      %v839 = vadd.f32 0.0, %v838
      %840 = vmatmul.f32.gmra.mxu0 %v322
      %v841 = vpop.f32.mrf.mxu0
      %v842 = vadd.f32 0.0, %v841
      %843 = vmatmul.f32.gmra.mxu0 %v325
      %v844 = vpop.f32.mrf.mxu0
      %v845 = vadd.f32 0.0, %v844
      %846 = vmatmul.f32.gmra.mxu0 %v328
      %v847 = vpop.f32.mrf.mxu0
      %v848 = vadd.f32 0.0, %v847
      %849 = vmatmul.f32.gmra.mxu0 %v331
      %v850 = vpop.f32.mrf.mxu0
      %v851 = vadd.f32 0.0, %v850
      %852 = vmatmul.f32.gmra.mxu0 %v334
      %v853 = vpop.f32.mrf.mxu0
      %v854 = vadd.f32 0.0, %v853
      %855 = vmatmul.f32.gmra.mxu0 %v337
      %v856 = vpop.f32.mrf.mxu0
      %v857 = vadd.f32 0.0, %v856
      %858 = vmatmul.f32.gmra.mxu0 %v340
      %v859 = vpop.f32.mrf.mxu0
      %v860 = vadd.f32 0.0, %v859
      %861 = vmatmul.f32.gmra.mxu0 %v343
      %v862 = vpop.f32.mrf.mxu0
      %v863 = vadd.f32 0.0, %v862
      %864 = vmatmul.f32.gmra.mxu0 %v346
      %v865 = vpop.f32.mrf.mxu0
      %v866 = vadd.f32 0.0, %v865
      %867 = vmatmul.f32.gmra.mxu0 %v349
      %v868 = vpop.f32.mrf.mxu0
      %v869 = vadd.f32 0.0, %v868
      %870 = vmatmul.f32.gmra.mxu0 %v352
      %v871 = vpop.f32.mrf.mxu0
      %v872 = vadd.f32 0.0, %v871
      %873 = vdwg.mxu0
      %v875 = vsel %vm461, %v785, 0
      %v878 = vsel %vm461, %v788, 0
      %v881 = vsel %vm461, %v791, 0
      %v884 = vsel %vm461, %v794, 0
      %v887 = vsel %vm461, %v797, 0
      %v890 = vsel %vm461, %v800, 0
      %v893 = vsel %vm461, %v803, 0
      %v896 = vsel %vm461, %v806, 0
      %v899 = vsel %vm461, %v809, 0
      %v902 = vsel %vm461, %v812, 0
      %v905 = vsel %vm461, %v815, 0
      %v908 = vsel %vm461, %v818, 0
      %v911 = vsel %vm461, %v821, 0
      %v914 = vsel %vm461, %v824, 0
      %v917 = vsel %vm461, %v827, 0
      %v920 = vsel %vm461, %v830, 0
      %v923 = vsel %vm461, %v833, 0
      %v926 = vsel %vm461, %v836, 0
      %v929 = vsel %vm461, %v839, 0
      %v932 = vsel %vm461, %v842, 0
      %v935 = vsel %vm461, %v845, 0
      %v938 = vsel %vm461, %v848, 0
      %v941 = vsel %vm461, %v851, 0
      %v944 = vsel %vm461, %v854, 0
      %v947 = vsel %vm461, %v857, 0
      %v950 = vsel %vm461, %v860, 0
      %v953 = vsel %vm461, %v863, 0
      %v956 = vsel %vm461, %v866, 0
      %v959 = vsel %vm461, %v869, 0
      %v962 = vsel %vm461, %v872, 0
      %964 = vmatpush.xpose.msra.mxu0 %v920
      %965 = vmatpush.xpose.msra.mxu0 %v917
      %966 = vmatpush.xpose.msra.mxu0 %v914
      %967 = vmatpush.xpose.msra.mxu0 %v911
      %968 = vmatpush.xpose.msra.mxu0 %v908
      %969 = vmatpush.xpose.msra.mxu0 %v905
      %970 = vmatpush.xpose.msra.mxu0 %v902
      %971 = vmatpush.xpose.msra.mxu0 %v899
      %972 = vmatpush.xpose.msra.mxu0 %v896
      %973 = vmatpush.xpose.msra.mxu0 %v893
      %974 = vmatpush.xpose.msra.mxu0 %v890
      %975 = vmatpush.xpose.msra.mxu0 %v887
      %976 = vmatpush.xpose.msra.mxu0 %v884
      %977 = vmatpush.xpose.msra.mxu0 %v881
      %978 = vmatpush.xpose.msra.mxu0 %v878
      %979 = vmatpush.xpose.msra.mxu0 %v875
      %980 = vmatmul.f32.gmra.mxu0 %v463
      %v981 = vpop.f32.mrf.mxu0
      %v982 = vadd.f32 0.0, %v981
      %983 = vmatmul.f32.gmra.mxu0 %v466
      %v984 = vpop.f32.mrf.mxu0
      %v985 = vadd.f32 0.0, %v984
      %986 = vmatmul.f32.gmra.mxu0 %v469
      %v987 = vpop.f32.mrf.mxu0
      %v988 = vadd.f32 0.0, %v987
      %989 = vmatmul.f32.gmra.mxu0 %v472
      %v990 = vpop.f32.mrf.mxu0
      %v991 = vadd.f32 0.0, %v990
      %992 = vmatmul.f32.gmra.mxu0 %v475
      %v993 = vpop.f32.mrf.mxu0
      %v994 = vadd.f32 0.0, %v993
      %995 = vmatmul.f32.gmra.mxu0 %v478
      %v996 = vpop.f32.mrf.mxu0
      %v997 = vadd.f32 0.0, %v996
      %998 = vmatmul.f32.gmra.mxu0 %v481
      %v999 = vpop.f32.mrf.mxu0
      %v1000 = vadd.f32 0.0, %v999
      %1001 = vmatmul.f32.gmra.mxu0 %v484
      %v1002 = vpop.f32.mrf.mxu0
      %v1003 = vadd.f32 0.0, %v1002
      %1004 = vmatmul.f32.gmra.mxu0 %v487
      %v1005 = vpop.f32.mrf.mxu0
      %v1006 = vadd.f32 0.0, %v1005
      %1007 = vmatmul.f32.gmra.mxu0 %v490
      %v1008 = vpop.f32.mrf.mxu0
      %v1009 = vadd.f32 0.0, %v1008
      %1010 = vmatmul.f32.gmra.mxu0 %v493
      %v1011 = vpop.f32.mrf.mxu0
      %v1012 = vadd.f32 0.0, %v1011
      %1013 = vmatmul.f32.gmra.mxu0 %v496
      %v1014 = vpop.f32.mrf.mxu0
      %v1015 = vadd.f32 0.0, %v1014
      %1016 = vmatmul.f32.gmra.mxu0 %v499
      %v1017 = vpop.f32.mrf.mxu0
      %v1018 = vadd.f32 0.0, %v1017
      %1019 = vmatmul.f32.gmra.mxu0 %v502
      %v1020 = vpop.f32.mrf.mxu0
      %v1021 = vadd.f32 0.0, %v1020
      %1022 = vmatmul.f32.gmra.mxu0 %v505
      %v1023 = vpop.f32.mrf.mxu0
      %v1024 = vadd.f32 0.0, %v1023
      %1025 = vmatmul.f32.gmra.mxu0 %v508
      %v1026 = vpop.f32.mrf.mxu0
      %v1027 = vadd.f32 0.0, %v1026
      %1028 = vdwg.mxu0
      %1029 = vmatpush.xpose.msra.mxu0 0.0
      %1030 = vmatpush.xpose.msra.mxu0 0.0
      %1031 = vmatpush.xpose.msra.mxu0 %v962
      %1032 = vmatpush.xpose.msra.mxu0 %v959
      %1033 = vmatpush.xpose.msra.mxu0 %v956
      %1034 = vmatpush.xpose.msra.mxu0 %v953
      %1035 = vmatpush.xpose.msra.mxu0 %v950
      %1036 = vmatpush.xpose.msra.mxu0 %v947
      %1037 = vmatpush.xpose.msra.mxu0 %v944
      %1038 = vmatpush.xpose.msra.mxu0 %v941
      %1039 = vmatpush.xpose.msra.mxu0 %v938
      %1040 = vmatpush.xpose.msra.mxu0 %v935
      %1041 = vmatpush.xpose.msra.mxu0 %v932
      %1042 = vmatpush.xpose.msra.mxu0 %v929
      %1043 = vmatpush.xpose.msra.mxu0 %v926
      %1044 = vmatpush.xpose.msra.mxu0 %v923
      %1045 = vmatmul.f32.gmra.mxu0 %v463
      %v1046 = vpop.f32.mrf.mxu0
      %v1047 = vadd.f32 0.0, %v1046
      %1048 = vmatmul.f32.gmra.mxu0 %v466
      %v1049 = vpop.f32.mrf.mxu0
      %v1050 = vadd.f32 0.0, %v1049
      %1051 = vmatmul.f32.gmra.mxu0 %v469
      %v1052 = vpop.f32.mrf.mxu0
      %v1053 = vadd.f32 0.0, %v1052
      %1054 = vmatmul.f32.gmra.mxu0 %v472
      %v1055 = vpop.f32.mrf.mxu0
      %v1056 = vadd.f32 0.0, %v1055
      %1057 = vmatmul.f32.gmra.mxu0 %v475
      %v1058 = vpop.f32.mrf.mxu0
      %v1059 = vadd.f32 0.0, %v1058
      %1060 = vmatmul.f32.gmra.mxu0 %v478
      %v1061 = vpop.f32.mrf.mxu0
      %v1062 = vadd.f32 0.0, %v1061
      %1063 = vmatmul.f32.gmra.mxu0 %v481
      %v1064 = vpop.f32.mrf.mxu0
      %v1065 = vadd.f32 0.0, %v1064
      %1066 = vmatmul.f32.gmra.mxu0 %v484
      %v1067 = vpop.f32.mrf.mxu0
      %v1068 = vadd.f32 0.0, %v1067
      %1069 = vmatmul.f32.gmra.mxu0 %v487
      %v1070 = vpop.f32.mrf.mxu0
      %v1071 = vadd.f32 0.0, %v1070
      %1072 = vmatmul.f32.gmra.mxu0 %v490
      %v1073 = vpop.f32.mrf.mxu0
      %v1074 = vadd.f32 0.0, %v1073
      %1075 = vmatmul.f32.gmra.mxu0 %v493
      %v1076 = vpop.f32.mrf.mxu0
      %v1077 = vadd.f32 0.0, %v1076
      %1078 = vmatmul.f32.gmra.mxu0 %v496
      %v1079 = vpop.f32.mrf.mxu0
      %v1080 = vadd.f32 0.0, %v1079
      %1081 = vmatmul.f32.gmra.mxu0 %v499
      %v1082 = vpop.f32.mrf.mxu0
      %v1083 = vadd.f32 0.0, %v1082
      %1084 = vmatmul.f32.gmra.mxu0 %v502
      %v1085 = vpop.f32.mrf.mxu0
      %v1086 = vadd.f32 0.0, %v1085
      %1087 = vmatmul.f32.gmra.mxu0 %v505
      %v1088 = vpop.f32.mrf.mxu0
      %v1089 = vadd.f32 0.0, %v1088
      %1090 = vmatmul.f32.gmra.mxu0 %v508
      %v1091 = vpop.f32.mrf.mxu0
      %v1092 = vadd.f32 0.0, %v1091
      %1093 = vdwg.mxu0
      %s1094 = scalar_lea.vmem %s213, 256
      %1095 = vst [vmem:[%s1094] sm:$0xff] %v982
      %1096 = vst.msk [vmem:[%s1094 + $0x8] sm:$0xff] %vm731, %v1047
      %1097 = vst [vmem:[%s1094 + $0x10] sm:$0xff] %v985
      %1098 = vst.msk [vmem:[%s1094 + $0x18] sm:$0xff] %vm731, %v1050
      %1099 = vst [vmem:[%s1094 + $0x20] sm:$0xff] %v988
      %1100 = vst.msk [vmem:[%s1094 + $0x28] sm:$0xff] %vm731, %v1053
      %1101 = vst [vmem:[%s1094 + $0x30] sm:$0xff] %v991
      %1102 = vst.msk [vmem:[%s1094 + $0x38] sm:$0xff] %vm731, %v1056
      %1103 = vst [vmem:[%s1094 + $0x40] sm:$0xff] %v994
      %1104 = vst.msk [vmem:[%s1094 + $0x48] sm:$0xff] %vm731, %v1059
      %1105 = vst [vmem:[%s1094 + $0x50] sm:$0xff] %v997
      %1106 = vst.msk [vmem:[%s1094 + $0x58] sm:$0xff] %vm731, %v1062
      %1107 = vst [vmem:[%s1094 + $0x60] sm:$0xff] %v1000
      %1108 = vst.msk [vmem:[%s1094 + $0x68] sm:$0xff] %vm731, %v1065
      %1109 = vst [vmem:[%s1094 + $0x70] sm:$0xff] %v1003
      %1110 = vst.msk [vmem:[%s1094 + $0x78] sm:$0xff] %vm731, %v1068
      %1111 = vst [vmem:[%s1094 + $0x80] sm:$0xff] %v1006
      %1112 = vst.msk [vmem:[%s1094 + $0x88] sm:$0xff] %vm731, %v1071
      %1113 = vst [vmem:[%s1094 + $0x90] sm:$0xff] %v1009
      %1114 = vst.msk [vmem:[%s1094 + $0x98] sm:$0xff] %vm731, %v1074
      %1115 = vst [vmem:[%s1094 + $0xa0] sm:$0xff] %v1012
      %1116 = vst.msk [vmem:[%s1094 + $0xa8] sm:$0xff] %vm731, %v1077
      %1117 = vst [vmem:[%s1094 + $0xb0] sm:$0xff] %v1015
      %1118 = vst.msk [vmem:[%s1094 + $0xb8] sm:$0xff] %vm731, %v1080
      %1119 = vst [vmem:[%s1094 + $0xc0] sm:$0xff] %v1018
      %1120 = vst.msk [vmem:[%s1094 + $0xc8] sm:$0xff] %vm731, %v1083
      %1121 = vst [vmem:[%s1094 + $0xd0] sm:$0xff] %v1021
      %1122 = vst.msk [vmem:[%s1094 + $0xd8] sm:$0xff] %vm731, %v1086
      %1123 = vst [vmem:[%s1094 + $0xe0] sm:$0xff] %v1024
      %1124 = vst.msk [vmem:[%s1094 + $0xe8] sm:$0xff] %vm731, %v1089
      %1125 = vst [vmem:[%s1094 + $0xf0] sm:$0x1] %v1027
      %1126 = vst.msk [vmem:[%s1094 + $0xf8] sm:$0x1] %vm762, %v1092
      %s1127 = smul.u32 2, %s19
      %p1128 = scmp.lt.s32.totalorder %s18, 1
      %s1129 = scalar_select %p1128, %s18, 1
      %p1130 = scmp.lt.s32.totalorder %s1127, 3
      %s1131 = scalar_select %p1130, %s1127, 3
      %s1132 = smul.addr %s1131, 32
      %s1133 = smul.addr %s1129, 128
      %s1134 = sadd.s32 %s1132, %s1133
      %s1135 = smul.addr %s1134, 8
      %s1136 = scalar_lea.vmem %s3, %s1135
      // Predicated region
      $region33: #{tpu_custom_call.1} parent=31 // pred_check
        %p1137 = pneg %p116
      $region34: #{tpu_custom_call.1} parent=31 // pred_check_branch
        %1139 = sbr.rel (%p1137) target = $region36
      $region35: #{tpu_custom_call.1} parent=31 // pred_region
        %s1140 = smul.u32 2, %s19
      $region36: #{tpu_custom_call.1} parent=31 // pred_fallthru
        _
    $region32: #{tpu_custom_call.1} parent=5 // pred_fallthru
      _
    %p1141 = scmp.le.s32.totalorder 2, %s9
    // Predicated region
    $region37: #{tpu_custom_call.1} parent=5 // pred_check
      %p1142 = pneg %p1141
    $region38: #{tpu_custom_call.1} parent=5 // pred_check_branch
      %1144 = sbr.rel (%p1142) target = $region40
    $region39: #{tpu_custom_call.1} parent=5 // pred_region
      %s1145 = ssub.s32 %s9, 2
      // Predicated region
      $region41: #{tpu_custom_call.1} parent=39 // pred_check
        %p1146 = pneg %p122
      $region42: #{tpu_custom_call.1} parent=39 // pred_check_branch
        %1148 = sbr.rel (%p1146) target = $region44
      $region43: #{tpu_custom_call.1} parent=39 // pred_region
        %s1149 = smul.u32 2, %s21
        %p1150 = scmp.lt.s32.totalorder %s20, 1
        %s1151 = scalar_select %p1150, %s20, 1
        %p1152 = scmp.lt.s32.totalorder %s1149, 3
        %s1153 = scalar_select %p1152, %s1149, 3
        %s1154 = smul.addr %s1153, 32
        %s1155 = smul.addr %s1151, 128
        %s1156 = sadd.s32 %s1154, %s1155
        %s1157 = smul.addr %s1156, 8
        %s1158 = scalar_lea.vmem %s3, %s1157
      $region44: #{tpu_custom_call.1} parent=39 // pred_fallthru
        _
    $region40: #{tpu_custom_call.1} parent=5 // pred_fallthru
      _
  $region6: #{tpu_custom_call.1} parent=0 // loop_footer
    %s13 = sadd.s32 1, %s9
  $region7: #{tpu_custom_call.1} parent=0 // loop_footer_branch
    %8 = sbr.rel target = $region3
  $region8: #{tpu_custom_call.1} parent=0 // loop_exit
    _

</llo_original>
